<compile_context>
chip_gen: v5e
topology: v5e:2x2
jax: 0.10.0
libtpu: 0.0.40
codegen_flags: <defaults>
</compile_context>

<pallas_src>
import functools

import jax
import jax.numpy as jnp
from jax.experimental import pallas as pl
from jax.experimental.pallas import tpu as pltpu


def _softplus(z):
    # Numerically stable softplus = log(1 + exp(z)).
    return jnp.maximum(z, 0.0) + jnp.log1p(jnp.exp(-jnp.abs(z)))


# ---- Pass 1: fused PAM KV / sumK + CAM energy reduction over N tiles ---------------

def stats_kernel(x_ref, wvk_ref, bvk_ref, kv_ref, sumk_ref, energy_ref,
                 *, c, n_tile, n_valid):
    t = pl.program_id(1)

    @pl.when(t == 0)
    def _():
        kv_ref[...] = jnp.zeros_like(kv_ref)
        sumk_ref[...] = jnp.zeros_like(sumk_ref)
        energy_ref[...] = jnp.zeros_like(energy_ref)

    x = x_ref[0]                                                        # (C, Nt)

    # PAM: fused [V; K] = [Wv; Wk] @ x + [bv; bk]   (V first -> aligned slices).
    proj = (jnp.dot(wvk_ref[...], x, preferred_element_type=jnp.float32)
            + bvk_ref[...])                                             # (C+D, Nt)
    v = proj[:c]                                                        # (C, Nt)
    k = _softplus(proj[c:])                                             # (D, Nt)

    if n_valid is not None:
        # Mask padded spatial columns (softplus(bias) != 0 there).
        col = t * n_tile + jax.lax.broadcasted_iota(jnp.int32, (1, n_tile), 1)
        k = jnp.where(col < n_valid, k, 0.0)

    kv_ref[0] += jax.lax.dot_general(k, v, (((1,), (1,)), ((), ())),
                                     preferred_element_type=jnp.float32)   # (D, C)
    sumk_ref[0] += jnp.sum(k, axis=1, keepdims=True)                        # (D, 1)

    # CAM: energy = X @ X^T  (padded columns of x are zero -> contribute nothing).
    energy_ref[0] += jax.lax.dot_general(x, x, (((1,), (1,)), ((), ())),
                                         preferred_element_type=jnp.float32)  # (C, C)


# ---- Per-batch CAM softmax: attention = softmax(rowmax(energy) - energy) -----------

def cam_softmax_kernel(energy_ref, att_ref):
    e = energy_ref[0]                                                   # (C, C)
    e_new = jnp.max(e, axis=-1, keepdims=True) - e
    m = jnp.max(e_new, axis=-1, keepdims=True)
    p = jnp.exp(e_new - m)
    att_ref[0] = (p / jnp.sum(p, axis=-1, keepdims=True)).astype(att_ref.dtype)


# ---- Pass 2: fused PAM normalization + CAM apply + residual combine ----------------

def fused_out_kernel(x_ref, wq_ref, bq_ref, kv_ref, sumk_ref, catt_ref, gam_ref,
                     comb_ref, cam_ref, pam_ref, *, eps):
    x = x_ref[0]                                                        # (C, Nt)

    # PAM: q for this tile, att = (KV^T q) / (q . (sumK + eps)).
    q = _softplus(jnp.dot(wq_ref[...], x, preferred_element_type=jnp.float32)
                  + bq_ref[...])                                        # (D, Nt)
    kv = kv_ref[0]                                                      # (D, C)
    sumk = sumk_ref[0]                                                  # (D, 1)
    denom = jnp.sum(q * (sumk + eps), axis=0, keepdims=True)            # (1, Nt)
    inv = pl.reciprocal(denom, approx=True)                             # EUP slot
    pam_att = jax.lax.dot_general(kv, q, (((0,), (0,)), ((), ())),
                                  preferred_element_type=jnp.float32) * inv  # (C, Nt)

    # CAM: out = attention @ x.
    cam_out = jnp.dot(catt_ref[0], x, preferred_element_type=jnp.float32)    # (C, Nt)

    g_pam = gam_ref[0]
    g_cam = gam_ref[1]
    pam_ref[0] = pam_att.astype(pam_ref.dtype)
    cam_ref[0] = cam_out.astype(cam_ref.dtype)
    # (gamma_cam*cam_out + x) + (x + gamma_pam*pam_att)
    comb_ref[0] = (2.0 * x + g_cam * cam_out + g_pam * pam_att).astype(comb_ref.dtype)


# ---- Wrapper ------------------------------------------------------------------------

def pam_cam_layer_apply(x_nchw, params, eps=1e-6, n_tile_target=512):
    """Pallas forward of PAM_CAM_Layer.

    Returns (cam + pam, [cam_attention_map, pam_weight_value]) in NCHW, matching the
    PyTorch PAM_CAM_Layer.forward semantics.
    """
    B, C, H, W = x_nchw.shape
    N = H * W
    D = params["wq"].shape[0]  # in_places // scale

    # Channels-first, spatial-flattened (B, C, N): pure reshape, no transpose.
    x = x_nchw.reshape(B, C, N).astype(jnp.float32)

    # Lane-aligned N tiling (tile multiple of 128); pad + mask if N is ragged.
    n_pad128 = -(-N // 128) * 128
    n_tile = max(128, min((n_tile_target // 128) * 128, n_pad128))
    n_pad = -(-N // n_tile) * n_tile
    if n_pad != N:
        x = jnp.pad(x, ((0, 0), (0, 0), (0, n_pad - N)))
    nt = n_pad // n_tile
    n_valid = N if n_pad != N else None

    # 1x1-conv weights stay (out_ch, in_ch); fuse [Wv; Wk] for pass 1.
    wq = params["wq"].reshape(D, C).astype(jnp.float32)
    bq = params["bq"].reshape(D, 1).astype(jnp.float32)
    wk = params["wk"].reshape(D, C).astype(jnp.float32)
    bk = params["bk"].reshape(D, 1).astype(jnp.float32)
    wv = params["wv"].reshape(C, C).astype(jnp.float32)
    bv = params["bv"].reshape(C, 1).astype(jnp.float32)
    wvk = jnp.concatenate([wv, wk], axis=0)     # (C+D, C)
    bvk = jnp.concatenate([bv, bk], axis=0)     # (C+D, 1)
    gammas = jnp.stack([params["gamma_pam"].reshape(()),
                        params["gamma_cam"].reshape(())]).astype(jnp.float32)  # (2,)

    const = lambda b, t: (0, 0)  # noqa: E731  (grid-invariant weight blocks)

    # ---- Pass 1: per-batch KV / sumK / energy reduction over N tiles ----------------
    kv, sumk, energy = pl.pallas_call(
        functools.partial(stats_kernel, c=C, n_tile=n_tile, n_valid=n_valid),
        out_shape=(jax.ShapeDtypeStruct((B, D, C), jnp.float32),
                   jax.ShapeDtypeStruct((B, D, 1), jnp.float32),
                   jax.ShapeDtypeStruct((B, C, C), jnp.float32)),
        grid=(B, nt),
        in_specs=[
            pl.BlockSpec((1, C, n_tile), lambda b, t: (b, 0, t)),   # x tile
            pl.BlockSpec((C + D, C), const),                        # [Wv; Wk]
            pl.BlockSpec((C + D, 1), const),                        # [bv; bk]
        ],
        out_specs=(pl.BlockSpec((1, D, C), lambda b, t: (b, 0, 0)),   # KV acc
                   pl.BlockSpec((1, D, 1), lambda b, t: (b, 0, 0)),   # sumK acc
                   pl.BlockSpec((1, C, C), lambda b, t: (b, 0, 0))),  # energy acc
        compiler_params=pltpu.CompilerParams(
            dimension_semantics=("parallel", "arbitrary")),
    )(x, wvk, bvk)

    # ---- CAM softmax over channel energy (tiny, per batch) --------------------------
    cam_att = pl.pallas_call(
        cam_softmax_kernel,
        out_shape=jax.ShapeDtypeStruct((B, C, C), jnp.float32),
        grid=(B,),
        in_specs=[pl.BlockSpec((1, C, C), lambda b: (b, 0, 0))],
        out_specs=pl.BlockSpec((1, C, C), lambda b: (b, 0, 0)),
        compiler_params=pltpu.CompilerParams(dimension_semantics=("parallel",)),
    )(energy)

    # ---- Pass 2: per-tile Q, PAM normalize, CAM apply, residual combine -------------
    comb, cam_out, pam_att = pl.pallas_call(
        functools.partial(fused_out_kernel, eps=eps),
        out_shape=(jax.ShapeDtypeStruct((B, C, n_pad), jnp.float32),
                   jax.ShapeDtypeStruct((B, C, n_pad), jnp.float32),
                   jax.ShapeDtypeStruct((B, C, n_pad), jnp.float32)),
        grid=(B, nt),
        in_specs=[
            pl.BlockSpec((1, C, n_tile), lambda b, t: (b, 0, t)),   # x tile
            pl.BlockSpec((D, C), const),                            # Wq
            pl.BlockSpec((D, 1), const),                            # bq
            pl.BlockSpec((1, D, C), lambda b, t: (b, 0, 0)),        # KV
            pl.BlockSpec((1, D, 1), lambda b, t: (b, 0, 0)),        # sumK
            pl.BlockSpec((1, C, C), lambda b, t: (b, 0, 0)),        # CAM attention
            pl.BlockSpec(memory_space=pltpu.MemorySpace.SMEM),      # gammas (scalars)
        ],
        out_specs=(pl.BlockSpec((1, C, n_tile), lambda b, t: (b, 0, t)),
                   pl.BlockSpec((1, C, n_tile), lambda b, t: (b, 0, t)),
                   pl.BlockSpec((1, C, n_tile), lambda b, t: (b, 0, t))),
        compiler_params=pltpu.CompilerParams(
            dimension_semantics=("parallel", "parallel")),
    )(x, wq, bq, kv, sumk, cam_att, gammas)

    # Strip spatial padding; outputs are already channels-first -> just reshape.
    comb = comb[:, :, :N].reshape(B, C, H, W)
    cam_out = cam_out[:, :, :N].reshape(B, C, H, W)
    pam_att = pam_att[:, :, :N].reshape(B, C, H, W)
    return comb, [cam_out, pam_att]


# ---- Pure-JAX reference mirroring the PyTorch forward exactly -----------------------

def pam_cam_reference(x_nchw, params, eps=1e-6):
    B, C, H, W = x_nchw.shape
    N = H * W
    xf = x_nchw.reshape(B, C, N).astype(jnp.float32)
    hp = jax.lax.Precision.HIGHEST

    # CAM_Module
    energy = jnp.einsum("bcn,bdn->bcd", xf, xf, precision=hp)
    energy_new = jnp.max(energy, axis=-1, keepdims=True) - energy
    attention = jax.nn.softmax(energy_new, axis=-1)
    cam_out = jnp.einsum("bcd,bdn->bcn", attention, xf,
                         precision=hp).reshape(B, C, H, W)
    cam = params["gamma_cam"].reshape(()) * cam_out + x_nchw

    # PAM_Module
    def conv1x1(w, b):
        return (jnp.einsum("dc,bcn->bdn", w.reshape(-1, C), xf, precision=hp)
                + b.reshape(1, -1, 1))

    Q = jax.nn.softplus(conv1x1(params["wq"], params["bq"]))   # (B, D, N)
    K = jax.nn.softplus(conv1x1(params["wk"], params["bk"]))   # (B, D, N)
    V = conv1x1(params["wv"], params["bv"])                    # (B, C, N)
    Qp = jnp.transpose(Q, (0, 2, 1))                           # (B, N, D)
    KV = jnp.einsum("bmn,bcn->bmc", K, V, precision=hp)        # (B, D, C)
    norm = 1.0 / jnp.einsum("bnm,bm->bn", Qp, jnp.sum(K, axis=-1) + eps, precision=hp)
    wv = jnp.einsum("bnm,bmc,bn->bcn", Qp, KV, norm,
                    precision=hp).reshape(B, C, H, W)
    pam = x_nchw + params["gamma_pam"].reshape(()) * wv

    return cam + pam, [cam_out, wv]


def init_params(key, in_places, scale=8):
    D = in_places // scale
    ks = jax.random.split(key, 6)
    s = 0.1
    return {
        # PyTorch init: both gammas start at zeros(1).
        "gamma_pam": jnp.zeros((1,), jnp.float32),
        "gamma_cam": jnp.zeros((1,), jnp.float32),
        "wq": s * jax.random.normal(ks[0], (D, in_places), jnp.float32),
        "bq": s * jax.random.normal(ks[1], (D,), jnp.float32),
        "wk": s * jax.random.normal(ks[2], (D, in_places), jnp.float32),
        "bk": s * jax.random.normal(ks[3], (D,), jnp.float32),
        "wv": s * jax.random.normal(ks[4], (in_places, in_places), jnp.float32),
        "bv": s * jax.random.normal(ks[5], (in_places,), jnp.float32),
    }


if __name__ == "__main__":
    key = jax.random.PRNGKey(0)
    k_x, k_p, k_x2 = jax.random.split(key, 3)

    # in_places=32, scale=8 -> D=4; H*W=256 -> two 128-wide N tiles.
    B, C, H, W = 2, 32, 16, 16
    x = 0.25 * jax.random.normal(k_x, (B, C, H, W), jnp.float32)
    params = init_params(k_p, C, scale=8)
    # Non-zero gammas (PyTorch inits them to 0) so both residual paths are exercised.
    params = dict(params,
                  gamma_pam=jnp.full((1,), 0.3, jnp.float32),
                  gamma_cam=jnp.full((1,), 0.2, jnp.float32))

    out, (cam_att, pam_att) = pam_cam_layer_apply(x, params, eps=1e-6,
                                                  n_tile_target=128)
    out = jax.block_until_ready(out)
    cam_att = jax.block_until_ready(cam_att)
    pam_att = jax.block_until_ready(pam_att)

    out_ref, (cam_ref, pam_ref) = pam_cam_reference(x, params, eps=1e-6)
    assert jnp.allclose(out, out_ref, atol=2e-3, rtol=2e-3), "combined output mismatch"
    assert jnp.allclose(cam_att, cam_ref, atol=2e-3, rtol=2e-3), "CAM map mismatch"
    assert jnp.allclose(pam_att, pam_ref, atol=2e-3, rtol=2e-3), "PAM map mismatch"

    # Ragged spatial size (N=144, not a multiple of 128) exercises the pad+mask path.
    x2 = 0.25 * jax.random.normal(k_x2, (1, C, 12, 12), jnp.float32)
    out2, (cam2, pam2) = pam_cam_layer_apply(x2, params, eps=1e-6)
    out2 = jax.block_until_ready(out2)
    out2_ref, (cam2_ref, pam2_ref) = pam_cam_reference(x2, params, eps=1e-6)
    assert jnp.allclose(out2, out2_ref, atol=2e-3, rtol=2e-3), "ragged output mismatch"
    assert jnp.allclose(cam2, cam2_ref, atol=2e-3, rtol=2e-3), "ragged CAM map mismatch"
    assert jnp.allclose(pam2, pam2_ref, atol=2e-3, rtol=2e-3), "ragged PAM map mismatch"

    print("KERNEL_OK")
</pallas_src>

<mosaic_0001>
module attributes {stable_mosaic.version = 11 : i64} {
  func.func @stats_kernel(%arg0: i32, %arg1: i32, %arg2: memref<1x32x128xf32, #tpu.memory_space<vmem>>, %arg3: memref<36x32xf32, #tpu.memory_space<vmem>>, %arg4: memref<36x1xf32, #tpu.memory_space<vmem>>, %arg5: memref<1x4x32xf32, #tpu.memory_space<vmem>>, %arg6: memref<1x4x1xf32, #tpu.memory_space<vmem>>, %arg7: memref<1x32x32xf32, #tpu.memory_space<vmem>>) attributes {dimension_semantics = [#tpu.dimension_semantics<parallel>, #tpu.dimension_semantics<arbitrary>], iteration_bounds = array<i64: 2, 2>, scalar_prefetch = 0 : i64, scratch_operands = 0 : i64, tpu.core_type = #tpu.core_type<tc>, window_params = [{transform_indices = @transform_0, window_bounds = array<i64: 1, 32, 128>}, {pipeline_mode = #tpu.pipeline_mode<synchronous>, transform_indices = @transform_1, window_bounds = array<i64: 36, 32>}, {pipeline_mode = #tpu.pipeline_mode<synchronous>, transform_indices = @transform_2, window_bounds = array<i64: 36, 1>}, {transform_indices = @transform_3, window_bounds = array<i64: 1, 4, 32>}, {transform_indices = @transform_4, window_bounds = array<i64: 1, 4, 1>}, {transform_indices = @transform_5, window_bounds = array<i64: 1, 32, 32>}]} {
    %c0_i32 = arith.constant 0 : i32
    %0 = arith.cmpi eq, %arg1, %c0_i32 : i32
    %1 = arith.extui %0 : i1 to i32
    %c0_i32_0 = arith.constant 0 : i32
    %2 = arith.cmpi ne, %1, %c0_i32_0 : i32
    scf.if %2 {
      %cst_30 = arith.constant 0.000000e+00 : f32
      %42 = vector.broadcast %cst_30 : f32 to vector<1x4x32xf32>
      %c0_31 = arith.constant 0 : index
      %c0_32 = arith.constant 0 : index
      %c0_33 = arith.constant 0 : index
      %43 = vector.load %arg5[%c0_31, %c0_32, %c0_33] : memref<1x4x32xf32, #tpu.memory_space<vmem>>, vector<1x4x32xf32>
      tpu.vector_store %arg5[%c0_31, %c0_32, %c0_33], %42 {strides = array<i32>} : memref<1x4x32xf32, #tpu.memory_space<vmem>>, vector<1x4x32xf32>,
      %cst_34 = arith.constant 0.000000e+00 : f32
      %44 = vector.broadcast %cst_34 : f32 to vector<1x4x1xf32>
      %c0_35 = arith.constant 0 : index
      %c0_36 = arith.constant 0 : index
      %c0_37 = arith.constant 0 : index
      %45 = vector.load %arg6[%c0_35, %c0_36, %c0_37] : memref<1x4x1xf32, #tpu.memory_space<vmem>>, vector<1x4x1xf32>
      tpu.vector_store %arg6[%c0_35, %c0_36, %c0_37], %44 {strides = array<i32>} : memref<1x4x1xf32, #tpu.memory_space<vmem>>, vector<1x4x1xf32>,
      %cst_38 = arith.constant 0.000000e+00 : f32
      %46 = vector.broadcast %cst_38 : f32 to vector<1x32x32xf32>
      %c0_39 = arith.constant 0 : index
      %c0_40 = arith.constant 0 : index
      %c0_41 = arith.constant 0 : index
      %47 = vector.load %arg7[%c0_39, %c0_40, %c0_41] : memref<1x32x32xf32, #tpu.memory_space<vmem>>, vector<1x32x32xf32>
      tpu.vector_store %arg7[%c0_39, %c0_40, %c0_41], %46 {strides = array<i32>} : memref<1x32x32xf32, #tpu.memory_space<vmem>>, vector<1x32x32xf32>,
    } else {
    }
    %c0 = arith.constant 0 : index
    %c0_1 = arith.constant 0 : index
    %c0_2 = arith.constant 0 : index
    %3 = vector.load %arg2[%c0, %c0_1, %c0_2] : memref<1x32x128xf32, #tpu.memory_space<vmem>>, vector<1x32x128xf32>
    %4 = vector.shape_cast %3 : vector<1x32x128xf32> to vector<32x128xf32>
    %c0_3 = arith.constant 0 : index
    %c0_4 = arith.constant 0 : index
    %5 = vector.load %arg3[%c0_3, %c0_4] : memref<36x32xf32, #tpu.memory_space<vmem>>, vector<36x32xf32>
    %cst = arith.constant dense<0.000000e+00> : vector<36x128xf32>
    %6 = tpu.matmul %5, %4, %cst {dimension_numbers = #tpu.dot_dimension_numbers<[1], [0], [0], [1], [0, 0, 1, 1], [], []>} : vector<36x32xf32>, vector<32x128xf32>, vector<36x128xf32> -> vector<36x128xf32>
    %c0_5 = arith.constant 0 : index
    %c0_6 = arith.constant 0 : index
    %7 = vector.load %arg4[%c0_5, %c0_6] : memref<36x1xf32, #tpu.memory_space<vmem>>, vector<36x1xf32>
    %8 = vector.broadcast %7 : vector<36x1xf32> to vector<36x128xf32>
    %9 = arith.addf %6, %8 : vector<36x128xf32>
    %10 = vector.extract_strided_slice %9 {offsets = [0, 0], sizes = [32, 128], strides = [1, 1]} : vector<36x128xf32> to vector<32x128xf32>
    %11 = vector.extract_strided_slice %9 {offsets = [32, 0], sizes = [4, 128], strides = [1, 1]} : vector<36x128xf32> to vector<4x128xf32>
    %cst_7 = arith.constant 0.000000e+00 : f32
    %12 = vector.broadcast %cst_7 : f32 to vector<4x128xf32>
    %13 = arith.maximumf %11, %12 : vector<4x128xf32>
    %14 = math.absf %11 : vector<4x128xf32>
    %cst_8 = arith.constant 0.000000e+00 : f32
    %15 = vector.broadcast %cst_8 : f32 to vector<4x128xf32>
    %16 = arith.subf %15, %14 : vector<4x128xf32>
    %17 = math.exp %16 : vector<4x128xf32>
    %18 = math.log1p %17 : vector<4x128xf32>
    %19 = arith.addf %13, %18 : vector<4x128xf32>
    %c0_9 = arith.constant 0 : index
    %c0_10 = arith.constant 0 : index
    %c0_11 = arith.constant 0 : index
    %20 = vector.load %arg5[%c0_9, %c0_10, %c0_11] : memref<1x4x32xf32, #tpu.memory_space<vmem>>, vector<1x4x32xf32>
    %21 = vector.shape_cast %20 : vector<1x4x32xf32> to vector<4x32xf32>
    %cst_12 = arith.constant dense<0.000000e+00> : vector<4x32xf32>
    %22 = tpu.matmul %19, %10, %cst_12 {dimension_numbers = #tpu.dot_dimension_numbers<[1], [1], [0], [0], [0, 0, 1, 0], [], []>} : vector<4x128xf32>, vector<32x128xf32>, vector<4x32xf32> -> vector<4x32xf32>
    %23 = arith.addf %21, %22 : vector<4x32xf32>
    %c0_13 = arith.constant 0 : index
    %c0_14 = arith.constant 0 : index
    %c0_15 = arith.constant 0 : index
    %24 = vector.load %arg5[%c0_13, %c0_14, %c0_15] : memref<1x4x32xf32, #tpu.memory_space<vmem>>, vector<1x4x32xf32>
    %25 = vector.shape_cast %24 : vector<1x4x32xf32> to vector<4x32xf32>
    %26 = vector.shape_cast %23 : vector<4x32xf32> to vector<1x4x32xf32>
    tpu.vector_store %arg5[%c0_13, %c0_14, %c0_15], %26 {strides = array<i32>} : memref<1x4x32xf32, #tpu.memory_space<vmem>>, vector<1x4x32xf32>,
    %c0_16 = arith.constant 0 : index
    %c0_17 = arith.constant 0 : index
    %c0_18 = arith.constant 0 : index
    %27 = vector.load %arg6[%c0_16, %c0_17, %c0_18] : memref<1x4x1xf32, #tpu.memory_space<vmem>>, vector<1x4x1xf32>
    %28 = vector.shape_cast %27 : vector<1x4x1xf32> to vector<4x1xf32>
    %cst_19 = arith.constant dense<0.000000e+00> : vector<4xf32>
    %29 = vector.multi_reduction <add>, %19, %cst_19 [1] : vector<4x128xf32> to vector<4xf32>
    %30 = vector.shape_cast %29 : vector<4xf32> to vector<4x1xf32>
    %31 = arith.addf %28, %30 : vector<4x1xf32>
    %c0_20 = arith.constant 0 : index
    %c0_21 = arith.constant 0 : index
    %c0_22 = arith.constant 0 : index
    %32 = vector.load %arg6[%c0_20, %c0_21, %c0_22] : memref<1x4x1xf32, #tpu.memory_space<vmem>>, vector<1x4x1xf32>
    %33 = vector.shape_cast %32 : vector<1x4x1xf32> to vector<4x1xf32>
    %34 = vector.shape_cast %31 : vector<4x1xf32> to vector<1x4x1xf32>
    tpu.vector_store %arg6[%c0_20, %c0_21, %c0_22], %34 {strides = array<i32>} : memref<1x4x1xf32, #tpu.memory_space<vmem>>, vector<1x4x1xf32>,
    %c0_23 = arith.constant 0 : index
    %c0_24 = arith.constant 0 : index
    %c0_25 = arith.constant 0 : index
    %35 = vector.load %arg7[%c0_23, %c0_24, %c0_25] : memref<1x32x32xf32, #tpu.memory_space<vmem>>, vector<1x32x32xf32>
    %36 = vector.shape_cast %35 : vector<1x32x32xf32> to vector<32x32xf32>
    %cst_26 = arith.constant dense<0.000000e+00> : vector<32x32xf32>
    %37 = tpu.matmul %4, %4, %cst_26 {dimension_numbers = #tpu.dot_dimension_numbers<[1], [1], [0], [0], [0, 0, 1, 0], [], []>} : vector<32x128xf32>, vector<32x128xf32>, vector<32x32xf32> -> vector<32x32xf32>
    %38 = arith.addf %36, %37 : vector<32x32xf32>
    %c0_27 = arith.constant 0 : index
    %c0_28 = arith.constant 0 : index
    %c0_29 = arith.constant 0 : index
    %39 = vector.load %arg7[%c0_27, %c0_28, %c0_29] : memref<1x32x32xf32, #tpu.memory_space<vmem>>, vector<1x32x32xf32>
    %40 = vector.shape_cast %39 : vector<1x32x32xf32> to vector<32x32xf32>
    %41 = vector.shape_cast %38 : vector<32x32xf32> to vector<1x32x32xf32>
    tpu.vector_store %arg7[%c0_27, %c0_28, %c0_29], %41 {strides = array<i32>} : memref<1x32x32xf32, #tpu.memory_space<vmem>>, vector<1x32x32xf32>,
    return
  }
  func.func @transform_0(%arg0: i32, %arg1: i32) -> (i32, i32, i32) {
    %c0_i32 = arith.constant 0 : i32
    %c0_i32_0 = arith.constant 0 : i32
    return %arg0, %c0_i32, %arg1 : i32, i32, i32
  }
  func.func @transform_1(%arg0: i32, %arg1: i32) -> (i32, i32) {
    %c0_i32 = arith.constant 0 : i32
    %c0_i32_0 = arith.constant 0 : i32
    %c0_i32_1 = arith.constant 0 : i32
    return %c0_i32, %c0_i32_0 : i32, i32
  }
  func.func @transform_2(%arg0: i32, %arg1: i32) -> (i32, i32) {
    %c0_i32 = arith.constant 0 : i32
    %c0_i32_0 = arith.constant 0 : i32
    %c0_i32_1 = arith.constant 0 : i32
    return %c0_i32, %c0_i32_0 : i32, i32
  }
  func.func @transform_3(%arg0: i32, %arg1: i32) -> (i32, i32, i32) {
    %c0_i32 = arith.constant 0 : i32
    %c0_i32_0 = arith.constant 0 : i32
    %c0_i32_1 = arith.constant 0 : i32
    return %arg0, %c0_i32, %c0_i32_0 : i32, i32, i32
  }
  func.func @transform_4(%arg0: i32, %arg1: i32) -> (i32, i32, i32) {
    %c0_i32 = arith.constant 0 : i32
    %c0_i32_0 = arith.constant 0 : i32
    %c0_i32_1 = arith.constant 0 : i32
    return %arg0, %c0_i32, %c0_i32_0 : i32, i32, i32
  }
  func.func @transform_5(%arg0: i32, %arg1: i32) -> (i32, i32, i32) {
    %c0_i32 = arith.constant 0 : i32
    %c0_i32_0 = arith.constant 0 : i32
    %c0_i32_1 = arith.constant 0 : i32
    return %arg0, %c0_i32, %c0_i32_0 : i32, i32, i32
  }
}

</mosaic_0001>

<llo_original>
// kernel: tpu_custom_call.1
$region0: #{tpu_custom_call.1}
  #allocation0 [shape = 'u32[]', space=smem, size = 0x4, offset = 0x4, fixed_abs, tag = 'smem constant byte address 0x4 - core index']
  #allocation1 [shape = 'u32[72,128]{1,0:T(1,128)}', space=vmem, size = 0x9000, scoped, tag = 'internal scratch']
  %s0 = inlined_call_operand.hbm [shape: f32[2,32,256], index: 0, kind: input, shape index: {}]
  %s1 = inlined_call_operand.vmem [shape: f32[36,32], index: 1, kind: input, shape index: {}]
  %s2 = inlined_call_operand.vmem [shape: f32[36,1], index: 2, kind: input, shape index: {}]
  %s3 = inlined_call_operand.hbm [shape: f32[2,4,32], index: 3, kind: output, shape index: {0}]
  %s4 = inlined_call_operand.vmem [shape: f32[2,4,1], index: 4, kind: output, shape index: {1}]
  %s5 = inlined_call_operand.hbm [shape: f32[2,32,32], index: 5, kind: output, shape index: {2}]
  %6 = xla_tuple %s3, %s4, %s5
  %s7 = sld [smem:[#allocation0]]
  $region69: #{tpu_custom_call.1} parent=0
    _
  %s9 = ssub.s32 1, %s7
  %s10 = scalar_select 0, %s9, %s7
  $region1: #{tpu_custom_call.1} parent=0
    #allocation2 [shape = 'u8[32768]{0}', space=vmem, size = 0x8000, scoped, tag = 'input window, operand 0']
    #allocation3 [shape = 's32[2]{0}', space=sflag, size = 0x8, scoped, tag = 'scoped memory for tpu_custom_call.1']
    #allocation4 [shape = 's32[2]{0}', space=sflag, size = 0x8, scoped, tag = 'scoped memory for tpu_custom_call.1']
    #allocation5 [shape = 'u8[4096]{0}', space=vmem, size = 0x1000, scoped, tag = 'output window, operand 0']
    #allocation6 [shape = 'u8[32768]{0}', space=vmem, size = 0x8000, scoped, tag = 'output window, operand 2']
    #allocation7 [shape = 's32[2]{0}', space=sflag, size = 0x8, scoped, tag = 'scoped memory for tpu_custom_call.1']
    %11 = vsyncpa [#allocation3], 0
    %s12 = scalar_lea.sflag [#allocation3], 1
    %13 = vsyncpa %s12, 0
    %14 = vsyncpa [#allocation4], 0
    %s15 = scalar_lea.sflag [#allocation4], 1
    %16 = vsyncpa %s15, 0
    %17 = vsyncpa [#allocation7], 0
    %s18 = scalar_lea.sflag [#allocation7], 1
    %19 = vsyncpa %s18, 0
    loop: start=0, step=1, limit=6
    $region2: #{tpu_custom_call.1} parent=1 // loop_pre_header
      _
    $region3: #{tpu_custom_call.1} parent=1 // loop_header
      %s21 = sphi 0, %s25
      %p22 = scmp.ge.s32.totalorder %s21, 6
      %s28 = sphi 0, %s40
      %s29 = sphi 0, %s36
      %s30 = sphi 0, %s28
      %s31 = sphi 0, %s29
      %s32 = sphi 0, %s30
      %s33 = sphi 0, %s31
      %s45 = sphi 0, %s47
      %s48 = sphi 0, %s45
      %s49 = sphi 0, %s48
      %s65 = sphi 0, %s49
      %s69 = sphi 0, %s69
      %s71 = sphi 0, %s69
      %s72 = sphi 0, %s71
      %s86 = sphi 0, %s72
      %s90 = sphi 0, %s90
      %s92 = sphi 0, %s90
      %s93 = sphi 0, %s92
      %s107 = sphi 0, %s93
      %s113 = sphi 0, %s115
      %s116 = sphi 0, %s113
      %s117 = sphi 0, %s116
      %s133 = sphi 0, %s117
      %s139 = sphi 0, %s141
      %s142 = sphi 0, %s139
      %s143 = sphi 0, %s142
      %s159 = sphi 0, %s143
      %s165 = sphi 0, %s167
      %s168 = sphi 0, %s165
      %s169 = sphi 0, %s168
      %s185 = sphi 0, %s169
    $region4: #{tpu_custom_call.1} parent=1 // loop_header_branch
      %24 = sbr.rel (%p22) target = $region8
    $region5: #{tpu_custom_call.1} parent=1 // loop_body
      %s26 = ssub.s32 %s21, 1
      %s27 = ssub.s32 %s21, 2
      %s34 = sadd.s32 1, %s29
      %p35 = scmp.ge.s32.totalorder %s34, 2
      %s36 = scalar_select %p35, 0, %s34
      %s37 = sadd.s32 1, %s28
      %s38 = scalar_select %p35, %s37, %s28
      %p39 = scmp.ge.s32.totalorder %s38, 2
      %s40 = scalar_select %p39, 0, %s38
      %s41 = ssub.s32 %s28, %s40
      %s42 = ssub.s32 %s29, %s36
      %s43 = sor.u32 %s41, %s42
      %p44 = scmp.eq.s32.totalorder %s43, 0
      %s46 = sadd.s32 %s45, 1
      %s47 = scalar_select %p44, %s45, %s46
      %p50 = pneg %p44
      %p51 = scmp.eq.s32.totalorder %s21, 3
      %p52 = por %p50, %p51
      %p53 = scmp.ne.s32.totalorder %s45, %s48
      %p54 = scmp.eq.s32.totalorder %s21, 0
      %p55 = por %p53, %p54
      %p56 = scmp.ne.s32.totalorder %s45, %s48
      %p57 = scmp.eq.s32.totalorder %s26, 3
      %p58 = por %p56, %p57
      %p59 = scmp.ne.s32.totalorder %s48, %s49
      %p60 = scmp.eq.s32.totalorder %s26, 0
      %p61 = por %p59, %p60
      %p62 = scmp.ne.s32.totalorder %s48, %s49
      %p63 = scmp.eq.s32.totalorder %s27, 3
      %p64 = por %p62, %p63
      %p66 = scmp.ne.s32.totalorder %s49, %s65
      %p67 = scmp.eq.s32.totalorder %s27, 0
      %p68 = por %p66, %p67
      %s70 = sadd.s32 %s69, 1
      %p73 = scmp.eq.s32.totalorder %s21, 3
      %p74 = scmp.ne.s32.totalorder %s69, %s71
      %p75 = scmp.eq.s32.totalorder %s21, 0
      %p76 = por %p74, %p75
      %p77 = scmp.ne.s32.totalorder %s69, %s71
      %p78 = scmp.eq.s32.totalorder %s26, 3
      %p79 = por %p77, %p78
      %p80 = scmp.ne.s32.totalorder %s71, %s72
      %p81 = scmp.eq.s32.totalorder %s26, 0
      %p82 = por %p80, %p81
      %p83 = scmp.ne.s32.totalorder %s71, %s72
      %p84 = scmp.eq.s32.totalorder %s27, 3
      %p85 = por %p83, %p84
      %p87 = scmp.ne.s32.totalorder %s72, %s86
      %p88 = scmp.eq.s32.totalorder %s27, 0
      %p89 = por %p87, %p88
      %s91 = sadd.s32 %s90, 1
      %p94 = scmp.eq.s32.totalorder %s21, 3
      %p95 = scmp.ne.s32.totalorder %s90, %s92
      %p96 = scmp.eq.s32.totalorder %s21, 0
      %p97 = por %p95, %p96
      %p98 = scmp.ne.s32.totalorder %s90, %s92
      %p99 = scmp.eq.s32.totalorder %s26, 3
      %p100 = por %p98, %p99
      %p101 = scmp.ne.s32.totalorder %s92, %s93
      %p102 = scmp.eq.s32.totalorder %s26, 0
      %p103 = por %p101, %p102
      %p104 = scmp.ne.s32.totalorder %s92, %s93
      %p105 = scmp.eq.s32.totalorder %s27, 3
      %p106 = por %p104, %p105
      %p108 = scmp.ne.s32.totalorder %s93, %s107
      %p109 = scmp.eq.s32.totalorder %s27, 0
      %p110 = por %p108, %p109
      %s111 = ssub.s32 %s28, %s40
      %p112 = scmp.eq.s32.totalorder %s111, 0
      %s114 = sadd.s32 %s113, 1
      %s115 = scalar_select %p112, %s113, %s114
      %p118 = pneg %p112
      %p119 = scmp.eq.s32.totalorder %s21, 3
      %p120 = por %p118, %p119
      %p121 = scmp.ne.s32.totalorder %s113, %s116
      %p122 = scmp.eq.s32.totalorder %s21, 0
      %p123 = por %p121, %p122
      %p124 = scmp.ne.s32.totalorder %s113, %s116
      %p125 = scmp.eq.s32.totalorder %s26, 3
      %p126 = por %p124, %p125
      %p127 = scmp.ne.s32.totalorder %s116, %s117
      %p128 = scmp.eq.s32.totalorder %s26, 0
      %p129 = por %p127, %p128
      %p130 = scmp.ne.s32.totalorder %s116, %s117
      %p131 = scmp.eq.s32.totalorder %s27, 3
      %p132 = por %p130, %p131
      %p134 = scmp.ne.s32.totalorder %s117, %s133
      %p135 = scmp.eq.s32.totalorder %s27, 0
      %p136 = por %p134, %p135
      %s137 = ssub.s32 %s28, %s40
      %p138 = scmp.eq.s32.totalorder %s137, 0
      %s140 = sadd.s32 %s139, 1
      %s141 = scalar_select %p138, %s139, %s140
      %p144 = pneg %p138
      %p145 = scmp.eq.s32.totalorder %s21, 3
      %p146 = por %p144, %p145
      %p147 = scmp.ne.s32.totalorder %s139, %s142
      %p148 = scmp.eq.s32.totalorder %s21, 0
      %p149 = por %p147, %p148
      %p150 = scmp.ne.s32.totalorder %s139, %s142
      %p151 = scmp.eq.s32.totalorder %s26, 3
      %p152 = por %p150, %p151
      %p153 = scmp.ne.s32.totalorder %s142, %s143
      %p154 = scmp.eq.s32.totalorder %s26, 0
      %p155 = por %p153, %p154
      %p156 = scmp.ne.s32.totalorder %s142, %s143
      %p157 = scmp.eq.s32.totalorder %s27, 3
      %p158 = por %p156, %p157
      %p160 = scmp.ne.s32.totalorder %s143, %s159
      %p161 = scmp.eq.s32.totalorder %s27, 0
      %p162 = por %p160, %p161
      %s163 = ssub.s32 %s28, %s40
      %p164 = scmp.eq.s32.totalorder %s163, 0
      %s166 = sadd.s32 %s165, 1
      %s167 = scalar_select %p164, %s165, %s166
      %p170 = pneg %p164
      %p171 = scmp.eq.s32.totalorder %s21, 3
      %p172 = por %p170, %p171
      %p173 = scmp.ne.s32.totalorder %s165, %s168
      %p174 = scmp.eq.s32.totalorder %s21, 0
      %p175 = por %p173, %p174
      %p176 = scmp.ne.s32.totalorder %s165, %s168
      %p177 = scmp.eq.s32.totalorder %s26, 3
      %p178 = por %p176, %p177
      %p179 = scmp.ne.s32.totalorder %s168, %s169
      %p180 = scmp.eq.s32.totalorder %s26, 0
      %p181 = por %p179, %p180
      %p182 = scmp.ne.s32.totalorder %s168, %s169
      %p183 = scmp.eq.s32.totalorder %s27, 3
      %p184 = por %p182, %p183
      %p186 = scmp.ne.s32.totalorder %s169, %s185
      %p187 = scmp.eq.s32.totalorder %s27, 0
      %p188 = por %p186, %p187
      %p189 = scmp.le.s32.totalorder 1, %s21
      %p190 = scmp.lt.s32.totalorder %s21, 5
      %p191 = pnand %p189, %p190
      %p192 = pneg %p191
      // Predicated region
      $region9: #{tpu_custom_call.1} parent=5 // pred_check
        _
      $region10: #{tpu_custom_call.1} parent=5 // pred_check_branch
        %194 = sbr.rel (%p191) target = $region12
      $region11: #{tpu_custom_call.1} parent=5 // pred_region
        %s195 = ssub.s32 %s21, 1
        // Predicated region
        $region13: #{tpu_custom_call.1} parent=11 // pred_check
          %p196 = pneg %p82
        $region14: #{tpu_custom_call.1} parent=11 // pred_check_branch
          %198 = sbr.rel (%p196) target = $region16
        $region15: #{tpu_custom_call.1} parent=11 // pred_region
          _
        $region16: #{tpu_custom_call.1} parent=11 // pred_fallthru
          _
        // Predicated region
        $region17: #{tpu_custom_call.1} parent=11 // pred_check
          %p199 = pneg %p103
        $region18: #{tpu_custom_call.1} parent=11 // pred_check_branch
          %201 = sbr.rel (%p199) target = $region20
        $region19: #{tpu_custom_call.1} parent=11 // pred_region
          _
        $region20: #{tpu_custom_call.1} parent=11 // pred_fallthru
          _
      $region12: #{tpu_custom_call.1} parent=5 // pred_fallthru
        _
      %p202 = scmp.lt.s32.totalorder %s21, 4
      // Predicated region
      $region21: #{tpu_custom_call.1} parent=5 // pred_check
        %p203 = pneg %p202
      $region22: #{tpu_custom_call.1} parent=5 // pred_check_branch
        %205 = sbr.rel (%p203) target = $region24
      $region23: #{tpu_custom_call.1} parent=5 // pred_region
        // Predicated region
        $region25: #{tpu_custom_call.1} parent=23 // pred_check
          %p206 = pneg %p55
        $region26: #{tpu_custom_call.1} parent=23 // pred_check_branch
          %208 = sbr.rel (%p206) target = $region28
        $region27: #{tpu_custom_call.1} parent=23 // pred_region
          %s209 = sand.u32 %s45, 1
          %s210 = scalar_lea.sflag [#allocation3], %s209
          %s211 = sand.u32 %s45, 1
          %s212 = smul.addr %s211, 32
          %s213 = scalar_lea.vmem [#allocation2], %s212
          %215 = vsyncadd %s210, 0
          %s216 = smul.addr %s28, 8
          %s217 = sadd.s32 %s29, %s216
          %s218 = smul.addr %s217, 8
          %s219 = scalar_lea.hbm %s0, %s218
          %s220 = sshll.u32 %s219, 4
          %s221 = int_to_ptr.hbm [resolvable:$true] %s220
          %s222 = sshll.u32 %s213, 4
          %s223 = int_to_ptr.vmem [resolvable:$true] %s222
          %228 = dma.hbm_to_vmem [thread:$0]  %s221, 512, %s223, %s210, 256, 128, 8
        $region28: #{tpu_custom_call.1} parent=23 // pred_fallthru
          _
      $region24: #{tpu_custom_call.1} parent=5 // pred_fallthru
        _
      %p229 = scmp.le.s32.totalorder 1, %s21
      %p230 = scmp.lt.s32.totalorder %s21, 5
      %p231 = pnand %p229, %p230
      %p232 = pneg %p231
      // Predicated region
      $region29: #{tpu_custom_call.1} parent=5 // pred_check
        _
      $region30: #{tpu_custom_call.1} parent=5 // pred_check_branch
        %234 = sbr.rel (%p231) target = $region32
      $region31: #{tpu_custom_call.1} parent=5 // pred_region
        %s235 = ssub.s32 %s21, 1
        %s236 = sand.u32 %s48, 1
        %s237 = scalar_lea.sflag [#allocation3], %s236
        %s238 = sand.u32 %s48, 1
        %s239 = smul.addr %s238, 32
        %s240 = scalar_lea.vmem [#allocation2], %s239
        // Predicated region
        $region33: #{tpu_custom_call.1} parent=31 // pred_check
          %p241 = pneg %p61
        $region34: #{tpu_custom_call.1} parent=31 // pred_check_branch
          %243 = sbr.rel (%p241) target = $region36
        $region35: #{tpu_custom_call.1} parent=31 // pred_region
          %245 = dma.done %s237, 512
        $region36: #{tpu_custom_call.1} parent=31 // pred_fallthru
          _
        %s246 = sand.u32 %s48, 1
        %s247 = scalar_lea.sflag [#allocation3], %s246
        %s248 = sand.u32 %s48, 1
        %s249 = smul.addr %s248, 32
        %s250 = scalar_lea.vmem [#allocation2], %s249
        %p251 = pneg %p61
        %p252 = pneg %p58
        %p253 = pneg %p82
        %p254 = pneg %p79
        %p255 = pneg %p103
        %p256 = pneg %p100
        %p257 = pneg %p129
        %p258 = pneg %p126
        %s259 = sand.u32 %s116, 1
        %s260 = scalar_lea.sflag [#allocation4], %s259
        %s261 = sand.u32 %s116, 1
        %s262 = smul.addr %s261, 4
        %s263 = scalar_lea.vmem [#allocation5], %s262
        %p264 = pneg %p155
        %p265 = pneg %p152
        %p266 = scmp.lt.s32.totalorder %s30, 1
        %s267 = scalar_select %p266, %s30, 1
        %s268 = smul.addr %s267, 4
        %s269 = scalar_lea.vmem %s4, %s268
        %p270 = pneg %p181
        %p271 = pneg %p178
        %s272 = sand.u32 %s168, 1
        %s273 = scalar_lea.sflag [#allocation7], %s272
        %s274 = sand.u32 %s168, 1
        %s275 = smul.addr %s274, 32
        %s276 = scalar_lea.vmem [#allocation6], %s275
        %p277 = scmp.lt.s32.totalorder %s30, 1
        %s278 = scalar_select %p277, %s30, 1
        %s279 = smul.addr %s278, 4
        %s280 = scalar_lea.vmem %s4, %s279
        %p281 = scmp.eq.s32.totalorder %s31, 0
        // Predicated region
        $region37: #{tpu_custom_call.1} parent=31 // pred_check
          %p282 = pneg %p281
        $region38: #{tpu_custom_call.1} parent=31 // pred_check_branch
          %284 = sbr.rel (%p282) target = $region40
        $region39: #{tpu_custom_call.1} parent=31 // pred_region
          %vm285 = vcmask 257024
          %286 = vst.msk [vmem:[%s263] sm:$0xf] %vm285, 0.0
          %vm287 = vcmask 3072
          %288 = vst.msk [vmem:[%s280] sm:$0xf] %vm287, 0.0
          %vm289 = vcmask 261120
          %290 = vst.msk [vmem:[%s276] sm:$0xff] %vm289, 0.0
          %291 = vst.msk [vmem:[%s276 + $0x8] sm:$0xff] %vm289, 0.0
          %292 = vst.msk [vmem:[%s276 + $0x10] sm:$0xff] %vm289, 0.0
          %293 = vst.msk [vmem:[%s276 + $0x18] sm:$0xff] %vm289, 0.0
        $region40: #{tpu_custom_call.1} parent=31 // pred_fallthru
          _
        %v294 = vld [vmem:[%s240] sm:$0xff]
        %v295 = vld [vmem:[%s240 + $0x8] sm:$0xff]
        %v296 = vld [vmem:[%s240 + $0x10] sm:$0xff]
        %v297 = vld [vmem:[%s240 + $0x18] sm:$0xff]
        %v298 = vld [vmem:[%s1] sm:$0xff]
        %v299 = vld [vmem:[%s1 + $0x8] sm:$0xff]
        %v300 = vld [vmem:[%s1 + $0x10] sm:$0xff]
        %v301 = vld [vmem:[%s1 + $0x18] sm:$0xff]
        %v302 = vld [vmem:[%s1 + $0x20] sm:$0xf]
        %v303 = vld [vmem:[%s2] sm:$0xff]
        %v304 = vld [vmem:[%s2 + $0x8] sm:$0xff]
        %v305 = vld [vmem:[%s2 + $0x10] sm:$0xff]
        %v306 = vld [vmem:[%s2 + $0x18] sm:$0xff]
        %v307 = vld [vmem:[%s2 + $0x20] sm:$0xf]
        %309 = vset.pattern.permute.xlu0 0
        %310 = vperm.xlu0 %309, %v303
        %v311 = vpop.permute.xlu0 %310
        %314 = vset.pattern.permute.xlu0 0
        %315 = vperm.xlu0 %314, %v304
        %v316 = vpop.permute.xlu0 %315
        %319 = vset.pattern.permute.xlu0 0
        %320 = vperm.xlu0 %319, %v305
        %v321 = vpop.permute.xlu0 %320
        %324 = vset.pattern.permute.xlu0 0
        %325 = vperm.xlu0 %324, %v306
        %v326 = vpop.permute.xlu0 %325
        %329 = vset.pattern.permute.xlu0 0
        %330 = vperm.xlu0 %329, %v307
        %v331 = vpop.permute.xlu0 %330
        %vm333 = vcmask 261120
        %v335 = vsel %vm333, %v298, 0
        %v338 = vsel %vm333, %v299, 0
        %v341 = vsel %vm333, %v300, 0
        %v344 = vsel %vm333, %v301, 0
        %v347 = vsel %vm333, %v302, 0
        %349 = vmatpush.msra.mxu0 0.0
        %350 = vmatpush.msra.mxu0 0.0
        %351 = vmatpush.msra.mxu0 0.0
        %352 = vmatpush.msra.mxu0 0.0
        %353 = vmatpush.msra.mxu0 0.0
        %354 = vmatpush.msra.mxu0 0.0
        %355 = vmatpush.msra.mxu0 0.0
        %356 = vmatpush.msra.mxu0 0.0
        %357 = vmatpush.msra.mxu0 0.0
        %358 = vmatpush.msra.mxu0 0.0
        %359 = vmatpush.msra.mxu0 0.0
        %360 = vmatpush.msra.mxu0 0.0
        %361 = vmatpush.msra.mxu0 %v297
        %362 = vmatpush.msra.mxu0 %v296
        %363 = vmatpush.msra.mxu0 %v295
        %364 = vmatpush.msra.mxu0 %v294
        %365 = vmatmul.f32.gmra.mxu0 %v335
        %v366 = vpop.f32.mrf.mxu0
        %v367 = vadd.f32 %v311, %v366
        %368 = vmatmul.f32.gmra.mxu0 %v338
        %v369 = vpop.f32.mrf.mxu0
        %v370 = vadd.f32 %v316, %v369
        %371 = vmatmul.f32.gmra.mxu0 %v341
        %v372 = vpop.f32.mrf.mxu0
        %v373 = vadd.f32 %v321, %v372
        %374 = vmatmul.f32.gmra.mxu0 %v344
        %v375 = vpop.f32.mrf.mxu0
        %v376 = vadd.f32 %v326, %v375
        %377 = vmatmul.f32.gmra.mxu0 %v347
        %v378 = vpop.f32.mrf.mxu0
        %v379 = vadd.f32 %v331, %v378
        %380 = vdwg.mxu0
        %v381 = vmax.f32 %v379, 0.0
        %v382 = vand.u32 2147483647, %v379
        %v383 = vsub.f32 0.0, %v382
        %v384 = vmul.f32 %v383, 1.442695
        %v385 = vpow.pop %v384
        %v386 = vadd.f32 %v385, 1.0
        %v387 = vlog2.pop %v386
        %v388 = vmul.f32 %v387, 0.6931472
        %v389 = vmul.f32 -0.5, %v385
        %v390 = vadd.f32 %v389, 1.0
        %v391 = vmul.f32 %v390, %v385
        %v392 = vand.u32 2147483647, %v385
        %vm393 = vcmp.lt.f32.partialorder %v392, 0.0004427343
        %v394 = vsel %vm393, %v391, %v388
        %v395 = vadd.f32 %v381, %v394
        %v396 = vld [vmem:[%s263] sm:$0xf]
        %397 = vmatpush.xpose.msra.mxu0 0.0
        %398 = vmatpush.xpose.msra.mxu0 0.0
        %399 = vmatpush.xpose.msra.mxu0 0.0
        %400 = vmatpush.xpose.msra.mxu0 0.0
        %401 = vmatpush.xpose.msra.mxu0 0.0
        %402 = vmatpush.xpose.msra.mxu0 0.0
        %403 = vmatpush.xpose.msra.mxu0 0.0
        %404 = vmatpush.xpose.msra.mxu0 0.0
        %405 = vmatpush.xpose.msra.mxu0 0.0
        %406 = vmatpush.xpose.msra.mxu0 0.0
        %407 = vmatpush.xpose.msra.mxu0 0.0
        %408 = vmatpush.xpose.msra.mxu0 0.0
        %409 = vmatpush.xpose.msra.mxu0 %v376
        %410 = vmatpush.xpose.msra.mxu0 %v373
        %411 = vmatpush.xpose.msra.mxu0 %v370
        %412 = vmatpush.xpose.msra.mxu0 %v367
        %413 = vmatmul.f32.gmra.mxu0 %v395
        %v414 = vpop.f32.mrf.mxu0
        %v415 = vadd.f32 0.0, %v414
        %416 = vdwg.mxu0
        %v417 = vadd.f32 %v396, %v415
        %vm418 = vcmask 257024
        %419 = vst.msk [vmem:[%s263] sm:$0xf] %vm418, %v417
        %v420 = vld [vmem:[%s280] sm:$0xf]
        %vm421 = vcmask 1043456
        %v422 = vsel %vm421, %v395, 0.0
        %423 = vadd.xlane.f32.xlu0 %v422
        %v424 = vpop.xlane.xlu0 %423
        %v425 = vadd.f32 %v420, %v424
        %vm426 = vcmask 3072
        %427 = vst.msk [vmem:[%s280] sm:$0xf] %vm426, %v425
        %v428 = vld [vmem:[%s276] sm:$0xff]
        %v429 = vld [vmem:[%s276 + $0x8] sm:$0xff]
        %v430 = vld [vmem:[%s276 + $0x10] sm:$0xff]
        %v431 = vld [vmem:[%s276 + $0x18] sm:$0xff]
        %432 = vmatpush.xpose.msra.mxu0 0.0
        %433 = vmatpush.xpose.msra.mxu0 0.0
        %434 = vmatpush.xpose.msra.mxu0 0.0
        %435 = vmatpush.xpose.msra.mxu0 0.0
        %436 = vmatpush.xpose.msra.mxu0 0.0
        %437 = vmatpush.xpose.msra.mxu0 0.0
        %438 = vmatpush.xpose.msra.mxu0 0.0
        %439 = vmatpush.xpose.msra.mxu0 0.0
        %440 = vmatpush.xpose.msra.mxu0 0.0
        %441 = vmatpush.xpose.msra.mxu0 0.0
        %442 = vmatpush.xpose.msra.mxu0 0.0
        %443 = vmatpush.xpose.msra.mxu0 0.0
        %444 = vmatpush.xpose.msra.mxu0 %v297
        %445 = vmatpush.xpose.msra.mxu0 %v296
        %446 = vmatpush.xpose.msra.mxu0 %v295
        %447 = vmatpush.xpose.msra.mxu0 %v294
        %448 = vmatmul.f32.gmra.mxu0 %v294
        %v449 = vpop.f32.mrf.mxu0
        %v450 = vadd.f32 0.0, %v449
        %451 = vmatmul.f32.gmra.mxu0 %v295
        %v452 = vpop.f32.mrf.mxu0
        %v453 = vadd.f32 0.0, %v452
        %454 = vmatmul.f32.gmra.mxu0 %v296
        %v455 = vpop.f32.mrf.mxu0
        %v456 = vadd.f32 0.0, %v455
        %457 = vmatmul.f32.gmra.mxu0 %v297
        %v458 = vpop.f32.mrf.mxu0
        %v459 = vadd.f32 0.0, %v458
        %460 = vdwg.mxu0
        %v461 = vadd.f32 %v428, %v450
        %v462 = vadd.f32 %v429, %v453
        %v463 = vadd.f32 %v430, %v456
        %v464 = vadd.f32 %v431, %v459
        %465 = vst.msk [vmem:[%s276] sm:$0xff] %vm333, %v461
        %466 = vst.msk [vmem:[%s276 + $0x8] sm:$0xff] %vm333, %v462
        %467 = vst.msk [vmem:[%s276 + $0x10] sm:$0xff] %vm333, %v463
        %468 = vst.msk [vmem:[%s276 + $0x18] sm:$0xff] %vm333, %v464
        %s469 = sand.u32 %s116, 1
        %s470 = scalar_lea.sflag [#allocation4], %s469
        %s471 = sand.u32 %s116, 1
        %s472 = smul.addr %s471, 4
        %s473 = scalar_lea.vmem [#allocation5], %s472
        %p474 = scmp.lt.s32.totalorder %s30, 1
        %s475 = scalar_select %p474, %s30, 1
        %s476 = smul.addr %s475, 4
        %s477 = scalar_lea.vmem %s4, %s476
        %s478 = sand.u32 %s168, 1
        %s479 = scalar_lea.sflag [#allocation7], %s478
        %s480 = sand.u32 %s168, 1
        %s481 = smul.addr %s480, 32
        %s482 = scalar_lea.vmem [#allocation6], %s481
        // Predicated region
        $region41: #{tpu_custom_call.1} parent=31 // pred_check
          %p483 = pneg %p126
        $region42: #{tpu_custom_call.1} parent=31 // pred_check_branch
          %485 = sbr.rel (%p483) target = $region44
        $region43: #{tpu_custom_call.1} parent=31 // pred_region
          %487 = vsyncadd %s470, 0
          %s488 = smul.addr %s30, 4
          %s489 = scalar_lea.hbm %s3, %s488
          %s491 = sshll.u32 %s473, 4
          %s492 = int_to_ptr.vmem [resolvable:$true] %s491
          %s493 = sshll.u32 %s489, 4
          %s494 = int_to_ptr.hbm [resolvable:$true] %s493
          %496 = dma.vmem_to_hbm [thread:$0]  %s492, 64, %s494, %s470
        $region44: #{tpu_custom_call.1} parent=31 // pred_fallthru
          _
        // Predicated region
        $region45: #{tpu_custom_call.1} parent=31 // pred_check
          %p497 = pneg %p152
        $region46: #{tpu_custom_call.1} parent=31 // pred_check_branch
          %499 = sbr.rel (%p497) target = $region48
        $region47: #{tpu_custom_call.1} parent=31 // pred_region
          _
        $region48: #{tpu_custom_call.1} parent=31 // pred_fallthru
          _
        // Predicated region
        $region49: #{tpu_custom_call.1} parent=31 // pred_check
          %p500 = pneg %p178
        $region50: #{tpu_custom_call.1} parent=31 // pred_check_branch
          %502 = sbr.rel (%p500) target = $region52
        $region51: #{tpu_custom_call.1} parent=31 // pred_region
          %504 = vsyncadd %s479, 0
          %s505 = smul.addr %s30, 4
          %s506 = smul.addr %s505, 8
          %s507 = scalar_lea.hbm %s5, %s506
          %s508 = sshll.u32 %s482, 4
          %s509 = int_to_ptr.vmem [resolvable:$true] %s508
          %s510 = sshll.u32 %s507, 4
          %s511 = int_to_ptr.hbm [resolvable:$true] %s510
          %516 = dma.vmem_to_hbm [thread:$0]  %s509, 512, %s511, %s479, 128, 128, 8
        $region52: #{tpu_custom_call.1} parent=31 // pred_fallthru
          _
      $region32: #{tpu_custom_call.1} parent=5 // pred_fallthru
        _
      %p517 = scmp.le.s32.totalorder 2, %s21
      // Predicated region
      $region53: #{tpu_custom_call.1} parent=5 // pred_check
        %p518 = pneg %p517
      $region54: #{tpu_custom_call.1} parent=5 // pred_check_branch
        %520 = sbr.rel (%p518) target = $region56
      $region55: #{tpu_custom_call.1} parent=5 // pred_region
        %s521 = ssub.s32 %s21, 2
        // Predicated region
        $region57: #{tpu_custom_call.1} parent=55 // pred_check
          %p522 = pneg %p132
        $region58: #{tpu_custom_call.1} parent=55 // pred_check_branch
          %524 = sbr.rel (%p522) target = $region60
        $region59: #{tpu_custom_call.1} parent=55 // pred_region
          %s525 = sand.u32 %s117, 1
          %s526 = scalar_lea.sflag [#allocation4], %s525
          %s527 = sand.u32 %s117, 1
          %s528 = smul.addr %s527, 4
          %s529 = scalar_lea.vmem [#allocation5], %s528
          %531 = dma.done %s526, 64
        $region60: #{tpu_custom_call.1} parent=55 // pred_fallthru
          _
        // Predicated region
        $region61: #{tpu_custom_call.1} parent=55 // pred_check
          %p532 = pneg %p158
        $region62: #{tpu_custom_call.1} parent=55 // pred_check_branch
          %534 = sbr.rel (%p532) target = $region64
        $region63: #{tpu_custom_call.1} parent=55 // pred_region
          %p535 = scmp.lt.s32.totalorder %s32, 1
          %s536 = scalar_select %p535, %s32, 1
          %s537 = smul.addr %s536, 4
          %s538 = scalar_lea.vmem %s4, %s537
        $region64: #{tpu_custom_call.1} parent=55 // pred_fallthru
          _
        // Predicated region
        $region65: #{tpu_custom_call.1} parent=55 // pred_check
          %p539 = pneg %p184
        $region66: #{tpu_custom_call.1} parent=55 // pred_check_branch
          %541 = sbr.rel (%p539) target = $region68
        $region67: #{tpu_custom_call.1} parent=55 // pred_region
          %s542 = sand.u32 %s169, 1
          %s543 = scalar_lea.sflag [#allocation7], %s542
          %s544 = sand.u32 %s169, 1
          %s545 = smul.addr %s544, 32
          %s546 = scalar_lea.vmem [#allocation6], %s545
          %548 = dma.done %s543, 512
        $region68: #{tpu_custom_call.1} parent=55 // pred_fallthru
          _
      $region56: #{tpu_custom_call.1} parent=5 // pred_fallthru
        _
    $region6: #{tpu_custom_call.1} parent=1 // loop_footer
      %s25 = sadd.s32 1, %s21
    $region7: #{tpu_custom_call.1} parent=1 // loop_footer_branch
      %20 = sbr.rel target = $region3
    $region8: #{tpu_custom_call.1} parent=1 // loop_exit
      _
    %549 = vsyncpa [#allocation3], 1
    %s550 = scalar_lea.sflag [#allocation3], 1
    %551 = vsyncpa %s550, 1
    %552 = vsyncpa [#allocation4], 1
    %s553 = scalar_lea.sflag [#allocation4], 1
    %554 = vsyncpa %s553, 1
    %555 = vsyncpa [#allocation7], 1
    %s556 = scalar_lea.sflag [#allocation7], 1
    %557 = vsyncpa %s556, 1

</llo_original>
